<compile_context>
chip_gen: v5e
topology: v5e:2x2
jax: 0.10.0
libtpu: 0.0.40
codegen_flags: <defaults>
</compile_context>

<pallas_src>
import jax
import jax.numpy as jnp
from jax.experimental import pallas as pl
from jax.experimental.pallas import tpu as pltpu


# ---------------------------------------------------------------------------
# Pallas kernel factory: fused one-hot input path + LSTM recurrence +
# fused action/value head + lane-masked log_softmax.
# ---------------------------------------------------------------------------
def _make_kernel(*, T, N_blk, H, out_dim, D_blk, offs, unroll_t=16):
    o_tbl, o_bx, o_whh, o_wh, o_wc, o_bh = offs
    H4 = 4 * H

    def kernel(idx_ref, w_ref, out_ref):
        # idx_ref: (T, N_blk, 3) int32 -- already offset per feature; negative
        #          (masked) entries never match any one-hot column.
        # w_ref  : (R, L) f32 packed weights (see _precompose for layout).
        # out_ref: (N_blk, L) f32 -- [:, :out_dim]=logpi, [:, out_dim]=value.
        tbl = w_ref[o_tbl:o_tbl + D_blk, 0:H4]     # (D_blk, 4H) fused gate table
        b_x = w_ref[o_bx:o_bx + 1, 0:H4]           # (1, 4H)   input-path bias
        whh = w_ref[o_whh:o_whh + H, 0:H4]         # (H, 4H)   recurrent weight
        wh = w_ref[o_wh:o_wh + H, :]               # (H, L)    head rows acting on h
        wc = w_ref[o_wc:o_wc + H, :]               # (H, L)    head rows acting on c
        bh = w_ref[o_bh:o_bh + 1, :]               # (1, L)    head bias

        col = jax.lax.broadcasted_iota(jnp.int32, (N_blk, D_blk), 1)

        def gates_x(idx_t):
            # idx_t: (N_blk, 3).  Disjoint index ranges per feature -> OR of the
            # three matches is the concatenated one-hot; -1 matches nothing.
            oh = ((col == idx_t[:, 0:1]) | (col == idx_t[:, 1:2])
                  | (col == idx_t[:, 2:3])).astype(jnp.float32)
            return jnp.dot(oh, tbl, preferred_element_type=jnp.float32) + b_x

        def cell(gates, c):
            sg = jax.nn.sigmoid(gates)                 # one full-(N,4H) EUP pass
            i_g = sg[:, 0 * H:1 * H]
            f_g = sg[:, 1 * H:2 * H]
            g_g = 2.0 * sg[:, 2 * H:3 * H] - 1.0       # == tanh(pre) after 2x prescale
            o_g = sg[:, 3 * H:4 * H]
            c_new = f_g * c + i_g * g_g
            h_new = o_g * jnp.tanh(c_new)
            return h_new, c_new

        # t == 0: h == 0 -> skip the dead recurrent matmul on the serial path.
        h, c = cell(gates_x(idx_ref[0]), jnp.zeros((N_blk, H), jnp.float32))

        if T <= unroll_t:
            # Small static T: full unroll, static first-axis index loads.
            for t in range(1, T):
                g = gates_x(idx_ref[t]) + jnp.dot(
                    h, whh, preferred_element_type=jnp.float32)
                h, c = cell(g, c)
        else:
            # Large T: bounded vreg pressure, dynamic first-axis index loads.
            def body(t, hc):
                h_, c_ = hc
                g = gates_x(idx_ref[t]) + jnp.dot(
                    h_, whh, preferred_element_type=jnp.float32)
                return cell(g, c_)
            h, c = jax.lax.fori_loop(1, T, body, (h, c))

        # Fused heads: cat(h, c) @ [W_a | W_v]^T == h @ Wh + c @ Wc  (lane-dense).
        head = (jnp.dot(h, wh, preferred_element_type=jnp.float32)
                + jnp.dot(c, wc, preferred_element_type=jnp.float32)
                + bh)                                   # (N_blk, L)

        # log_softmax over the first out_dim lanes only; value lane (and lane
        # padding) passed through raw.  Masked lanes contribute exactly 0 to lse.
        lane = jax.lax.broadcasted_iota(jnp.int32, head.shape, 1)
        is_logit = lane < out_dim
        logits = jnp.where(is_logit, head, jnp.finfo(jnp.float32).min)
        m = jnp.max(logits, axis=-1, keepdims=True)
        shifted = logits - m
        lse = jnp.log(jnp.sum(jnp.where(is_logit, jnp.exp(shifted), 0.0),
                              axis=-1, keepdims=True))
        out_ref[...] = jnp.where(is_logit, shifted - lse, head)

    return kernel


# ---------------------------------------------------------------------------
# Wrapper-side algebraic precomposition + single packed weight buffer.
# ---------------------------------------------------------------------------
def _precompose(params, latency_dim, victim_acc_dim):
    H = params["w_hh_t"].shape[0]
    H4 = 4 * H
    out_dim = params["w_a_t"].shape[1]
    ld, vd = latency_dim, victim_acc_dim
    ad = params["embed"].shape[0]

    # linear_i followed by the LSTM input projection is linear-then-linear:
    #   (x @ Wi + b) @ Wih == x @ (Wi @ Wih) + b @ Wih
    w_fused = params["w_i_t"] @ params["w_ih_t"]          # (D_in, 4H)
    b_fused = params["b_i"] @ params["w_ih_t"]            # (1, 4H)

    # Fused one-hot gate table: rows [0,ld) latency, [ld,ld+vd) victim access,
    # [ld+vd, ld+vd+ad) action (embedding pre-multiplied in).
    tbl = jnp.concatenate(
        [w_fused[:ld], w_fused[ld:ld + vd],
         params["embed"] @ w_fused[ld + vd:]], axis=0)     # (D_tbl, 4H)
    D_tbl = ld + vd + ad

    # Pre-scale the candidate-gate (g) columns by 2 so the kernel can recover
    # tanh(g_pre) == 2*sigmoid(2*g_pre) - 1 from its single sigmoid pass.
    gscale = jnp.concatenate(
        [jnp.ones((1, 2 * H), jnp.float32),
         jnp.full((1, H), 2.0, jnp.float32),
         jnp.ones((1, H), jnp.float32)], axis=1)           # gate order i,f,g,o
    tbl = tbl * gscale
    b_fused = b_fused * gscale
    whh = params["w_hh_t"] * gscale

    # Fused action/value head: cat(h, c) @ [W_a | W_v]^T, split h-rows / c-rows.
    w_head = jnp.concatenate([params["w_a_t"], params["w_v_t"]], axis=1)  # (2H, out+1)
    b_head = jnp.concatenate([params["b_a"], params["b_v"]], axis=1)      # (1, out+1)
    wh_head, wc_head = w_head[:H], w_head[H:]

    # --- pack everything into ONE lane-dense, 8-row-aligned VMEM buffer ------
    L = max(H4, out_dim + 1)
    L = ((L + 127) // 128) * 128

    def pad_lanes(x):
        return jnp.pad(x, ((0, 0), (0, L - x.shape[1])))

    def up8(n):
        return ((n + 7) // 8) * 8

    pieces = [pad_lanes(tbl), pad_lanes(b_fused), pad_lanes(whh),
              pad_lanes(wh_head), pad_lanes(wc_head), pad_lanes(b_head)]
    offs, padded, rows = [], [], 0
    for p in pieces:
        offs.append(rows)
        r_pad = up8(p.shape[0])
        padded.append(jnp.pad(p, ((0, r_pad - p.shape[0]), (0, 0))))
        rows += r_pad
    w_packed = jnp.concatenate(padded, axis=0).astype(jnp.float32)  # (rows, L)

    meta = dict(H=H, out_dim=out_dim, D_tbl=D_tbl, D_blk=up8(D_tbl), L=L,
                offs=tuple(offs))
    return w_packed, meta


def cache_ppo_lstm_forward(obs, params, *, latency_dim, victim_acc_dim):
    w_packed, meta = _precompose(params, latency_dim, victim_acc_dim)
    H, out_dim, L = meta["H"], meta["out_dim"], meta["L"]
    ld, vd = latency_dim, victim_acc_dim

    # Index prep (tiny int32 work, stays in the wrapper): flip, offset per
    # feature so the in-kernel one-hot columns are disjoint; -1 (masked) stays
    # negative and never matches a column.
    obs_i = jnp.flip(obs.astype(jnp.int32), axis=1)
    l = obs_i[..., 0]
    v = obs_i[..., 1]
    a = obs_i[..., 2]
    # obs[..., 3] (step) is unbound but unused, exactly as in the PyTorch code.
    l_idx = jnp.where(l < 0, -1, l)
    v_idx = jnp.where(v < 0, -1, v + ld)
    a_idx = jnp.where(a < 0, -1, a + ld + vd)
    idx = jnp.stack([l_idx, v_idx, a_idx], axis=-1)        # (T=B, N=S, 3)

    T, N, _ = idx.shape
    block_n = min(N, 256)                                   # N-tile (megacore shard)
    grid = (pl.cdiv(N, block_n),)

    kernel = _make_kernel(T=T, N_blk=block_n, H=H, out_dim=out_dim,
                          D_blk=meta["D_blk"], offs=meta["offs"])

    out = pl.pallas_call(
        kernel,
        out_shape=jax.ShapeDtypeStruct((N, L), jnp.float32),
        grid=grid,
        in_specs=[
            pl.BlockSpec((T, block_n, 3), lambda n: (0, n, 0)),
            pl.BlockSpec(w_packed.shape, lambda n: (0, 0)),
        ],
        out_specs=pl.BlockSpec((block_n, L), lambda n: (n, 0)),
        compiler_params=pltpu.CompilerParams(
            dimension_semantics=("parallel",)),
    )(idx, w_packed)

    logpi = out[:, :out_dim]
    value = out[:, out_dim:out_dim + 1]
    return logpi, value


# ---------------------------------------------------------------------------
# Pure-JAX reference (mirrors the PyTorch forward, no fusion).
# ---------------------------------------------------------------------------
def reference_forward(obs, params, *, latency_dim, victim_acc_dim):
    obs = obs.astype(jnp.int32)
    assert obs.ndim == 3
    obs = jnp.flip(obs, axis=1)
    l = obs[..., 0]
    v = obs[..., 1]
    act = obs[..., 2]

    def one_hot_masked(src, n):
        mask = src == -1
        oh = jax.nn.one_hot(jnp.where(mask, 0, src), n, dtype=jnp.float32)
        return jnp.where(mask[..., None], 0.0, oh)

    l_oh = one_hot_masked(l, latency_dim)
    v_oh = one_hot_masked(v, victim_acc_dim)
    mask = act == -1
    emb = jnp.take(params["embed"], jnp.where(mask, 0, act), axis=0)
    emb = jnp.where(mask[..., None], 0.0, emb)
    x = jnp.concatenate([l_oh, v_oh, emb], axis=-1)

    z = x @ params["w_i_t"] + params["b_i"]          # (T, N, H)
    T, N, H = z.shape
    h = jnp.zeros((N, H), jnp.float32)
    c = jnp.zeros((N, H), jnp.float32)
    for t in range(T):
        gates = z[t] @ params["w_ih_t"] + h @ params["w_hh_t"]
        i_g = jax.nn.sigmoid(gates[:, :H])
        f_g = jax.nn.sigmoid(gates[:, H:2 * H])
        g_g = jnp.tanh(gates[:, 2 * H:3 * H])
        o_g = jax.nn.sigmoid(gates[:, 3 * H:])
        c = f_g * c + i_g * g_g
        h = o_g * jnp.tanh(c)
    hc = jnp.concatenate([h, c], axis=-1)
    p = hc @ params["w_a_t"] + params["b_a"]
    logpi = jax.nn.log_softmax(p, axis=-1)
    value = hc @ params["w_v_t"] + params["b_v"]
    return logpi, value


def init_params(key, *, latency_dim, victim_acc_dim, action_dim,
                action_embed_dim, hidden_dim, output_dim):
    input_dim = latency_dim + victim_acc_dim + action_embed_dim
    ks = jax.random.split(key, 9)

    def u(k, shape, fan_in):
        b = 1.0 / (fan_in ** 0.5)
        return jax.random.uniform(k, shape, jnp.float32, -b, b)

    return {
        # nn.Embedding(action_dim, action_embed_dim)  ~ N(0, 1)
        "embed": jax.random.normal(ks[0], (action_dim, action_embed_dim),
                                   jnp.float32),
        # linear_i: weight (H, D_in) stored transposed -> (D_in, H)
        "w_i_t": u(ks[1], (input_dim, hidden_dim), input_dim),
        "b_i":   u(ks[2], (1, hidden_dim), input_dim),
        # LSTM (bias=False): weight_ih_l0 (4H, H), weight_hh_l0 (4H, H),
        # stored transposed -> (H, 4H), gate order i, f, g, o.
        "w_ih_t": u(ks[3], (hidden_dim, 4 * hidden_dim), hidden_dim),
        "w_hh_t": u(ks[4], (hidden_dim, 4 * hidden_dim), hidden_dim),
        # action head: (output_dim, 2H) stored transposed -> (2H, output_dim)
        "w_a_t": u(ks[5], (2 * hidden_dim, output_dim), 2 * hidden_dim),
        "b_a":   u(ks[6], (1, output_dim), 2 * hidden_dim),
        # value head: (1, 2H) stored transposed -> (2H, 1)
        "w_v_t": u(ks[7], (2 * hidden_dim, 1), 2 * hidden_dim),
        "b_v":   u(ks[8], (1, 1), 2 * hidden_dim),
    }


if __name__ == "__main__":
    latency_dim = 4
    victim_acc_dim = 4
    action_dim = 8
    step_dim = 16            # unused by forward (last obs column is discarded)
    action_embed_dim = 8
    hidden_dim = 32
    output_dim = 16
    B, S = 2, 8              # obs: (batch, seq, 4)

    key = jax.random.PRNGKey(0)
    kp, ko = jax.random.split(key)
    params = init_params(kp, latency_dim=latency_dim,
                         victim_acc_dim=victim_acc_dim, action_dim=action_dim,
                         action_embed_dim=action_embed_dim,
                         hidden_dim=hidden_dim, output_dim=output_dim)

    k1, k2, k3, k4 = jax.random.split(ko, 4)
    l_col = jax.random.randint(k1, (B, S), -1, latency_dim)      # -1 = masked
    v_col = jax.random.randint(k2, (B, S), -1, victim_acc_dim)
    a_col = jax.random.randint(k3, (B, S), -1, action_dim)
    s_col = jax.random.randint(k4, (B, S), 0, step_dim)
    obs = jnp.stack([l_col, v_col, a_col, s_col], axis=-1)       # (B, S, 4)

    logpi, value = cache_ppo_lstm_forward(
        obs, params, latency_dim=latency_dim, victim_acc_dim=victim_acc_dim)
    jax.block_until_ready((logpi, value))

    ref_logpi, ref_value = reference_forward(
        obs, params, latency_dim=latency_dim, victim_acc_dim=victim_acc_dim)
    assert logpi.shape == (S, output_dim) and value.shape == (S, 1)
    assert jnp.allclose(logpi, ref_logpi, atol=1e-4, rtol=1e-4)
    assert jnp.allclose(value, ref_value, atol=1e-4, rtol=1e-4)

    print("KERNEL_OK")
</pallas_src>

<mosaic_0001>
module attributes {stable_mosaic.version = 11 : i64} {
  func.func @kernel(%arg0: i32, %arg1: memref<2x8x3xi32, #tpu.memory_space<vmem>>, %arg2: memref<128x128xf32, #tpu.memory_space<vmem>>, %arg3: memref<8x128xf32, #tpu.memory_space<vmem>>) attributes {dimension_semantics = [#tpu.dimension_semantics<parallel>], iteration_bounds = array<i64: 1>, scalar_prefetch = 0 : i64, scratch_operands = 0 : i64, tpu.core_type = #tpu.core_type<tc>, window_params = [{transform_indices = @transform_0, window_bounds = array<i64: 2, 8, 3>}, {pipeline_mode = #tpu.pipeline_mode<synchronous>, transform_indices = @transform_1, window_bounds = array<i64: 128, 128>}, {transform_indices = @transform_2, window_bounds = array<i64: 8, 128>}]} {
    %c0 = arith.constant 0 : index
    %c0_0 = arith.constant 0 : index
    %0 = vector.load %arg2[%c0, %c0_0] : memref<128x128xf32, #tpu.memory_space<vmem>>, vector<16x128xf32>
    %c16 = arith.constant 16 : index
    %c0_1 = arith.constant 0 : index
    %1 = vector.load %arg2[%c16, %c0_1] : memref<128x128xf32, #tpu.memory_space<vmem>>, vector<1x128xf32>
    %c24 = arith.constant 24 : index
    %c0_2 = arith.constant 0 : index
    %2 = vector.load %arg2[%c24, %c0_2] : memref<128x128xf32, #tpu.memory_space<vmem>>, vector<32x128xf32>
    %c56 = arith.constant 56 : index
    %c0_3 = arith.constant 0 : index
    %3 = vector.load %arg2[%c56, %c0_3] : memref<128x128xf32, #tpu.memory_space<vmem>>, vector<32x128xf32>
    %c88 = arith.constant 88 : index
    %c0_4 = arith.constant 0 : index
    %4 = vector.load %arg2[%c88, %c0_4] : memref<128x128xf32, #tpu.memory_space<vmem>>, vector<32x128xf32>
    %c120 = arith.constant 120 : index
    %c0_5 = arith.constant 0 : index
    %5 = vector.load %arg2[%c120, %c0_5] : memref<128x128xf32, #tpu.memory_space<vmem>>, vector<1x128xf32>
    %6 = tpu.iota {dimensions = array<i32: 1>} : vector<8x16xi32>
    %c0_6 = arith.constant 0 : index
    %c0_7 = arith.constant 0 : index
    %c0_8 = arith.constant 0 : index
    %7 = vector.load %arg1[%c0_6, %c0_7, %c0_8] : memref<2x8x3xi32, #tpu.memory_space<vmem>>, vector<1x8x3xi32>
    %8 = vector.shape_cast %7 : vector<1x8x3xi32> to vector<8x3xi32>
    %9 = vector.extract_strided_slice %8 {offsets = [0, 0], sizes = [8, 1], strides = [1, 1]} : vector<8x3xi32> to vector<8x1xi32>
    %10 = vector.broadcast %9 : vector<8x1xi32> to vector<8x16xi32>
    %11 = arith.cmpi eq, %6, %10 : vector<8x16xi32>
    %12 = vector.extract_strided_slice %8 {offsets = [0, 1], sizes = [8, 1], strides = [1, 1]} : vector<8x3xi32> to vector<8x1xi32>
    %13 = vector.broadcast %12 : vector<8x1xi32> to vector<8x16xi32>
    %14 = arith.cmpi eq, %6, %13 : vector<8x16xi32>
    %15 = arith.ori %11, %14 : vector<8x16xi1>
    %16 = vector.extract_strided_slice %8 {offsets = [0, 2], sizes = [8, 1], strides = [1, 1]} : vector<8x3xi32> to vector<8x1xi32>
    %17 = vector.broadcast %16 : vector<8x1xi32> to vector<8x16xi32>
    %18 = arith.cmpi eq, %6, %17 : vector<8x16xi32>
    %19 = arith.ori %15, %18 : vector<8x16xi1>
    %20 = arith.extui %19 : vector<8x16xi1> to vector<8x16xi32>
    %21 = arith.sitofp %20 : vector<8x16xi32> to vector<8x16xf32>
    %cst = arith.constant dense<0.000000e+00> : vector<8x128xf32>
    %22 = tpu.matmul %21, %0, %cst {dimension_numbers = #tpu.dot_dimension_numbers<[1], [0], [0], [1], [0, 0, 1, 1], [], []>} : vector<8x16xf32>, vector<16x128xf32>, vector<8x128xf32> -> vector<8x128xf32>
    %23 = vector.broadcast %1 : vector<1x128xf32> to vector<8x128xf32>
    %24 = arith.addf %22, %23 : vector<8x128xf32>
    %cst_9 = arith.constant 0.000000e+00 : f32
    %25 = vector.broadcast %cst_9 : f32 to vector<8x32xf32>
    %26 = arith.negf %24 : vector<8x128xf32>
    %27 = math.exp %26 : vector<8x128xf32>
    %cst_10 = arith.constant 1.000000e+00 : f32
    %28 = vector.broadcast %cst_10 : f32 to vector<8x128xf32>
    %29 = arith.addf %28, %27 : vector<8x128xf32>
    %30 = arith.divf %28, %29 : vector<8x128xf32>
    %31 = vector.extract_strided_slice %30 {offsets = [0, 0], sizes = [8, 32], strides = [1, 1]} : vector<8x128xf32> to vector<8x32xf32>
    %32 = vector.extract_strided_slice %30 {offsets = [0, 32], sizes = [8, 32], strides = [1, 1]} : vector<8x128xf32> to vector<8x32xf32>
    %33 = vector.extract_strided_slice %30 {offsets = [0, 64], sizes = [8, 32], strides = [1, 1]} : vector<8x128xf32> to vector<8x32xf32>
    %cst_11 = arith.constant 2.000000e+00 : f32
    %34 = vector.broadcast %cst_11 : f32 to vector<8x32xf32>
    %35 = arith.mulf %34, %33 : vector<8x32xf32>
    %cst_12 = arith.constant 1.000000e+00 : f32
    %36 = vector.broadcast %cst_12 : f32 to vector<8x32xf32>
    %37 = arith.subf %35, %36 : vector<8x32xf32>
    %38 = vector.extract_strided_slice %30 {offsets = [0, 96], sizes = [8, 32], strides = [1, 1]} : vector<8x128xf32> to vector<8x32xf32>
    %39 = arith.mulf %32, %25 : vector<8x32xf32>
    %40 = arith.mulf %31, %37 : vector<8x32xf32>
    %41 = arith.addf %39, %40 : vector<8x32xf32>
    %42 = math.tanh %41 : vector<8x32xf32>
    %43 = arith.mulf %38, %42 : vector<8x32xf32>
    %c1 = arith.constant 1 : index
    %c0_13 = arith.constant 0 : index
    %c0_14 = arith.constant 0 : index
    %44 = vector.load %arg1[%c1, %c0_13, %c0_14] : memref<2x8x3xi32, #tpu.memory_space<vmem>>, vector<1x8x3xi32>
    %45 = vector.shape_cast %44 : vector<1x8x3xi32> to vector<8x3xi32>
    %46 = vector.extract_strided_slice %45 {offsets = [0, 0], sizes = [8, 1], strides = [1, 1]} : vector<8x3xi32> to vector<8x1xi32>
    %47 = vector.broadcast %46 : vector<8x1xi32> to vector<8x16xi32>
    %48 = arith.cmpi eq, %6, %47 : vector<8x16xi32>
    %49 = vector.extract_strided_slice %45 {offsets = [0, 1], sizes = [8, 1], strides = [1, 1]} : vector<8x3xi32> to vector<8x1xi32>
    %50 = vector.broadcast %49 : vector<8x1xi32> to vector<8x16xi32>
    %51 = arith.cmpi eq, %6, %50 : vector<8x16xi32>
    %52 = arith.ori %48, %51 : vector<8x16xi1>
    %53 = vector.extract_strided_slice %45 {offsets = [0, 2], sizes = [8, 1], strides = [1, 1]} : vector<8x3xi32> to vector<8x1xi32>
    %54 = vector.broadcast %53 : vector<8x1xi32> to vector<8x16xi32>
    %55 = arith.cmpi eq, %6, %54 : vector<8x16xi32>
    %56 = arith.ori %52, %55 : vector<8x16xi1>
    %57 = arith.extui %56 : vector<8x16xi1> to vector<8x16xi32>
    %58 = arith.sitofp %57 : vector<8x16xi32> to vector<8x16xf32>
    %cst_15 = arith.constant dense<0.000000e+00> : vector<8x128xf32>
    %59 = tpu.matmul %58, %0, %cst_15 {dimension_numbers = #tpu.dot_dimension_numbers<[1], [0], [0], [1], [0, 0, 1, 1], [], []>} : vector<8x16xf32>, vector<16x128xf32>, vector<8x128xf32> -> vector<8x128xf32>
    %60 = vector.broadcast %1 : vector<1x128xf32> to vector<8x128xf32>
    %61 = arith.addf %59, %60 : vector<8x128xf32>
    %cst_16 = arith.constant dense<0.000000e+00> : vector<8x128xf32>
    %62 = tpu.matmul %43, %2, %cst_16 {dimension_numbers = #tpu.dot_dimension_numbers<[1], [0], [0], [1], [0, 0, 1, 1], [], []>} : vector<8x32xf32>, vector<32x128xf32>, vector<8x128xf32> -> vector<8x128xf32>
    %63 = arith.addf %61, %62 : vector<8x128xf32>
    %64 = arith.negf %63 : vector<8x128xf32>
    %65 = math.exp %64 : vector<8x128xf32>
    %cst_17 = arith.constant 1.000000e+00 : f32
    %66 = vector.broadcast %cst_17 : f32 to vector<8x128xf32>
    %67 = arith.addf %66, %65 : vector<8x128xf32>
    %68 = arith.divf %66, %67 : vector<8x128xf32>
    %69 = vector.extract_strided_slice %68 {offsets = [0, 0], sizes = [8, 32], strides = [1, 1]} : vector<8x128xf32> to vector<8x32xf32>
    %70 = vector.extract_strided_slice %68 {offsets = [0, 32], sizes = [8, 32], strides = [1, 1]} : vector<8x128xf32> to vector<8x32xf32>
    %71 = vector.extract_strided_slice %68 {offsets = [0, 64], sizes = [8, 32], strides = [1, 1]} : vector<8x128xf32> to vector<8x32xf32>
    %cst_18 = arith.constant 2.000000e+00 : f32
    %72 = vector.broadcast %cst_18 : f32 to vector<8x32xf32>
    %73 = arith.mulf %72, %71 : vector<8x32xf32>
    %cst_19 = arith.constant 1.000000e+00 : f32
    %74 = vector.broadcast %cst_19 : f32 to vector<8x32xf32>
    %75 = arith.subf %73, %74 : vector<8x32xf32>
    %76 = vector.extract_strided_slice %68 {offsets = [0, 96], sizes = [8, 32], strides = [1, 1]} : vector<8x128xf32> to vector<8x32xf32>
    %77 = arith.mulf %70, %41 : vector<8x32xf32>
    %78 = arith.mulf %69, %75 : vector<8x32xf32>
    %79 = arith.addf %77, %78 : vector<8x32xf32>
    %80 = math.tanh %79 : vector<8x32xf32>
    %81 = arith.mulf %76, %80 : vector<8x32xf32>
    %cst_20 = arith.constant dense<0.000000e+00> : vector<8x128xf32>
    %82 = tpu.matmul %81, %3, %cst_20 {dimension_numbers = #tpu.dot_dimension_numbers<[1], [0], [0], [1], [0, 0, 1, 1], [], []>} : vector<8x32xf32>, vector<32x128xf32>, vector<8x128xf32> -> vector<8x128xf32>
    %cst_21 = arith.constant dense<0.000000e+00> : vector<8x128xf32>
    %83 = tpu.matmul %79, %4, %cst_21 {dimension_numbers = #tpu.dot_dimension_numbers<[1], [0], [0], [1], [0, 0, 1, 1], [], []>} : vector<8x32xf32>, vector<32x128xf32>, vector<8x128xf32> -> vector<8x128xf32>
    %84 = arith.addf %82, %83 : vector<8x128xf32>
    %85 = vector.broadcast %5 : vector<1x128xf32> to vector<8x128xf32>
    %86 = arith.addf %84, %85 : vector<8x128xf32>
    %87 = tpu.iota {dimensions = array<i32: 1>} : vector<8x128xi32>
    %c16_i32 = arith.constant 16 : i32
    %88 = vector.broadcast %c16_i32 : i32 to vector<8x128xi32>
    %89 = arith.cmpi slt, %87, %88 : vector<8x128xi32>
    %cst_22 = arith.constant -3.40282347E+38 : f32
    %90 = vector.broadcast %cst_22 : f32 to vector<8x128xf32>
    %91 = arith.select %89, %86, %90 : vector<8x128xi1>, vector<8x128xf32>
    %cst_23 = arith.constant dense<0xFF800000> : vector<8xf32>
    %92 = vector.multi_reduction <maximumf>, %91, %cst_23 [1] : vector<8x128xf32> to vector<8xf32>
    %93 = vector.shape_cast %92 : vector<8xf32> to vector<8x1xf32>
    %94 = vector.broadcast %93 : vector<8x1xf32> to vector<8x128xf32>
    %95 = arith.subf %91, %94 : vector<8x128xf32>
    %96 = math.exp %95 : vector<8x128xf32>
    %cst_24 = arith.constant 0.000000e+00 : f32
    %97 = vector.broadcast %cst_24 : f32 to vector<8x128xf32>
    %98 = arith.select %89, %96, %97 : vector<8x128xi1>, vector<8x128xf32>
    %cst_25 = arith.constant dense<0.000000e+00> : vector<8xf32>
    %99 = vector.multi_reduction <add>, %98, %cst_25 [1] : vector<8x128xf32> to vector<8xf32>
    %100 = vector.shape_cast %99 : vector<8xf32> to vector<8x1xf32>
    %101 = math.log %100 : vector<8x1xf32>
    %102 = vector.broadcast %101 : vector<8x1xf32> to vector<8x128xf32>
    %103 = arith.subf %95, %102 : vector<8x128xf32>
    %104 = arith.select %89, %103, %86 : vector<8x128xi1>, vector<8x128xf32>
    %c0_26 = arith.constant 0 : index
    %c0_27 = arith.constant 0 : index
    %105 = vector.load %arg3[%c0_26, %c0_27] : memref<8x128xf32, #tpu.memory_space<vmem>>, vector<8x128xf32>
    tpu.vector_store %arg3[%c0_26, %c0_27], %104 {strides = array<i32>} : memref<8x128xf32, #tpu.memory_space<vmem>>, vector<8x128xf32>,
    return
  }
  func.func @transform_0(%arg0: i32) -> (i32, i32, i32) {
    %c0_i32 = arith.constant 0 : i32
    %c0_i32_0 = arith.constant 0 : i32
    %c0_i32_1 = arith.constant 0 : i32
    return %c0_i32, %arg0, %c0_i32_0 : i32, i32, i32
  }
  func.func @transform_1(%arg0: i32) -> (i32, i32) {
    %c0_i32 = arith.constant 0 : i32
    %c0_i32_0 = arith.constant 0 : i32
    %c0_i32_1 = arith.constant 0 : i32
    return %c0_i32, %c0_i32_0 : i32, i32
  }
  func.func @transform_2(%arg0: i32) -> (i32, i32) {
    %c0_i32 = arith.constant 0 : i32
    %c0_i32_0 = arith.constant 0 : i32
    return %arg0, %c0_i32 : i32, i32
  }
}

</mosaic_0001>

<llo_original>
// kernel: tpu_custom_call.1
$region0: #{tpu_custom_call.1}
  #allocation0 [shape = 'u32[]', space=smem, size = 0x4, offset = 0x4, fixed_abs, tag = 'smem constant byte address 0x4 - core index']
  #allocation1 [shape = 'u32[72,128]{1,0:T(1,128)}', space=vmem, size = 0x9000, scoped, tag = 'internal scratch']
  %s0 = inlined_call_operand.vmem [shape: s32[2,8,3], index: 0, kind: input, shape index: {}]
  %s1 = inlined_call_operand.hbm [shape: f32[128,128], index: 1, kind: input, shape index: {}]
  %s2 = inlined_call_operand.hbm [shape: f32[8,128], index: 2, kind: output, shape index: {}]
  %s3 = sld [smem:[#allocation0]]
  $region22: #{tpu_custom_call.1} parent=0
    _
  %s5 = ssub.s32 1, %s3
  %s6 = scalar_select 0, %s5, %s3
  $region1: #{tpu_custom_call.1} parent=0
    #allocation2 [shape = 'u8[65536]{0}', space=vmem, size = 0x10000, scoped, tag = 'input window, operand 1, single buffered']
    #allocation3 [shape = 's32[1]{0}', space=sflag, size = 0x4, scoped, tag = 'scoped memory for tpu_custom_call.1']
    #allocation4 [shape = 's32[1]{0}', space=sflag, size = 0x4, scoped, tag = 'scoped memory for tpu_custom_call.1']
    #allocation5 [shape = 'u8[4096]{0}', space=vmem, size = 0x1000, scoped, tag = 'output window, operand 0, single buffered']
    %7 = vsyncpa [#allocation3], 0
    %8 = vsyncpa [#allocation4], 0
    // Predicated region
    $region2: #{tpu_custom_call.1} parent=1 // pred_check
      _
    $region3: #{tpu_custom_call.1} parent=1 // pred_check_branch
      %10 = sbr.rel (0) target = $region5
    $region4: #{tpu_custom_call.1} parent=1 // pred_region
      _
    $region5: #{tpu_custom_call.1} parent=1 // pred_fallthru
      _
    // Predicated region
    $region6: #{tpu_custom_call.1} parent=1 // pred_check
      _
    $region7: #{tpu_custom_call.1} parent=1 // pred_check_branch
      %12 = sbr.rel (0) target = $region9
    $region8: #{tpu_custom_call.1} parent=1 // pred_region
      %14 = vsyncadd [#allocation3], 0
      %s15 = sshll.u32 %s1, 4
      %s16 = int_to_ptr.hbm [resolvable:$true] %s15
      %s17 = sshll.u32 [#allocation2], 4
      %s18 = int_to_ptr.vmem [resolvable:$true] %s17
      %23 = dma.hbm_to_vmem [thread:$0]  %s16, 2048, %s18, [#allocation3], 128, 128, 8
    $region9: #{tpu_custom_call.1} parent=1 // pred_fallthru
      _
    // Predicated region
    $region10: #{tpu_custom_call.1} parent=1 // pred_check
      _
    $region11: #{tpu_custom_call.1} parent=1 // pred_check_branch
      %25 = sbr.rel (0) target = $region13
    $region12: #{tpu_custom_call.1} parent=1 // pred_region
      %27 = dma.done [#allocation3], 2048
    $region13: #{tpu_custom_call.1} parent=1 // pred_fallthru
      _
    %v28 = vld [vmem:[#allocation2] sm:$0xff]
    %v29 = vld [vmem:[#allocation2 + $0x8] sm:$0xff]
    %v30 = vld [vmem:[#allocation2 + $0x10] sm:$0x1]
    %v31 = vld [vmem:[#allocation2 + $0x18] sm:$0xff]
    %v32 = vld [vmem:[#allocation2 + $0x20] sm:$0xff]
    %v33 = vld [vmem:[#allocation2 + $0x28] sm:$0xff]
    %v34 = vld [vmem:[#allocation2 + $0x30] sm:$0xff]
    %v35 = vld [vmem:[#allocation2 + $0x38] sm:$0xff]
    %v36 = vld [vmem:[#allocation2 + $0x40] sm:$0xff]
    %v37 = vld [vmem:[#allocation2 + $0x48] sm:$0xff]
    %v38 = vld [vmem:[#allocation2 + $0x50] sm:$0xff]
    %v39 = vld [vmem:[#allocation2 + $0x58] sm:$0xff]
    %v40 = vld [vmem:[#allocation2 + $0x60] sm:$0xff]
    %v41 = vld [vmem:[#allocation2 + $0x68] sm:$0xff]
    %v42 = vld [vmem:[#allocation2 + $0x70] sm:$0xff]
    %v43 = vld [vmem:[#allocation2 + $0x78] sm:$0x1]
    %v44 = vlaneseq
    %v45 = vand.u32 %v44, 127
    %v46 = vld [vmem:[%s0] sm:$0xff]
    %47 = vset.pattern.permute.xlu0 0
    %48 = vperm.xlu0 %47, %v46
    %v49 = vpop.permute.xlu0 %48
    %vm50 = vcmp.eq.s32.totalorder %v45, %v49
    %51 = vset.pattern.permute.xlu0 1
    %52 = vperm.xlu0 %51, %v46
    %v53 = vpop.permute.xlu0 %52
    %vm54 = vcmp.eq.s32.totalorder %v45, %v53
    %vm55 = vmor %vm50, %vm54
    %56 = vset.pattern.permute.xlu0 2
    %57 = vperm.xlu0 %56, %v46
    %v58 = vpop.permute.xlu0 %57
    %vm59 = vcmp.eq.s32.totalorder %v45, %v58
    %vm60 = vmor %vm55, %vm59
    %v61 = vsel %vm60, 1, 0
    %v62 = vcvt.s32.f32 %v61
    %v63 = vperm.slane %v30, 0
    %vm64 = vcmask 130048
    %v66 = vsel %vm64, %v62, 0
    %68 = vmatpush.msra.mxu0 0.0
    %69 = vmatpush.msra.mxu0 0.0
    %70 = vmatpush.msra.mxu0 0.0
    %71 = vmatpush.msra.mxu0 0.0
    %72 = vmatpush.msra.mxu0 0.0
    %73 = vmatpush.msra.mxu0 0.0
    %74 = vmatpush.msra.mxu0 0.0
    %75 = vmatpush.msra.mxu0 0.0
    %76 = vmatpush.msra.mxu0 0.0
    %77 = vmatpush.msra.mxu0 0.0
    %78 = vmatpush.msra.mxu0 0.0
    %79 = vmatpush.msra.mxu0 0.0
    %80 = vmatpush.msra.mxu0 0.0
    %81 = vmatpush.msra.mxu0 0.0
    %82 = vmatpush.msra.mxu0 %v29
    %83 = vmatpush.msra.mxu0 %v28
    %84 = vmatmul.f32.gmra.mxu0 %v66
    %v85 = vpop.f32.mrf.mxu0
    %v86 = vadd.f32 %v63, %v85
    %87 = vdwg.mxu0
    %v88 = vxor.u32 %v86, 2147483648
    %v89 = vmul.f32 %v88, 1.442695
    %v90 = vpow.pop %v89
    %v91 = vadd.f32 %v90, 1.0
    %v92 = vrcp.pop %v91
    %v93 = vmul.f32 %v91, %v92
    %v94 = vsub.f32 1.0, %v93
    %v95 = vmul.f32 %v92, %v94
    %v96 = vadd.f32 %v92, %v95
    %vm97 = vweird.f32 %v91
    %vm98 = vweird.f32 %v92
    %vm99 = vmor %vm97, %vm98
    %v100 = vsel %vm99, %v92, %v96
    %v101 = vand.u32 2147483647, %v91
    %vm102 = vcmp.eq.f32.partialorder %v101, 8.507059e+37
    %v103 = vand.u32 %v91, 2147483648
    %v104 = vor.u32 1.1754944e-38, %v103
    %v105 = vsel %vm102, %v104, %v100
    %v106 = vmul.f32 1.0, %v105
    %v107 = vmul.f32 %v106, 2.0
    %v108 = vsub.f32 %v107, 1.0
    %v109 = vmul.f32 %v106, 0.0
    %111 = vrot.lane.b32.xlu0 %v108, 64
    %v112 = vpop.permute.xlu0 %111
    %v114 = vmul.f32 %v106, %v112
    %116 = vrot.lane.b32.xlu0 %v114, 32
    %v117 = vpop.permute.xlu0 %116
    %v119 = vadd.f32 %v109, %v117
    %v120 = vtanh.pop %v119
    %122 = vrot.lane.b32.xlu0 %v120, 64
    %v123 = vpop.permute.xlu0 %122
    %v125 = vmul.f32 %v106, %v123
    %s126 = scalar_lea.vmem %s0, 8
    %v127 = vld [vmem:[%s126] sm:$0xff]
    %128 = vset.pattern.permute.xlu0 0
    %129 = vperm.xlu0 %128, %v127
    %v130 = vpop.permute.xlu0 %129
    %vm131 = vcmp.eq.s32.totalorder %v45, %v130
    %132 = vset.pattern.permute.xlu0 1
    %133 = vperm.xlu0 %132, %v127
    %v134 = vpop.permute.xlu0 %133
    %vm135 = vcmp.eq.s32.totalorder %v45, %v134
    %vm136 = vmor %vm131, %vm135
    %137 = vset.pattern.permute.xlu0 2
    %138 = vperm.xlu0 %137, %v127
    %v139 = vpop.permute.xlu0 %138
    %vm140 = vcmp.eq.s32.totalorder %v45, %v139
    %vm141 = vmor %vm136, %vm140
    %v142 = vsel %vm141, 1, 0
    %v143 = vcvt.s32.f32 %v142
    %v145 = vsel %vm64, %v143, 0
    %147 = vmatpush.msra.mxu0 0.0
    %148 = vmatpush.msra.mxu0 0.0
    %149 = vmatpush.msra.mxu0 0.0
    %150 = vmatpush.msra.mxu0 0.0
    %151 = vmatpush.msra.mxu0 0.0
    %152 = vmatpush.msra.mxu0 0.0
    %153 = vmatpush.msra.mxu0 0.0
    %154 = vmatpush.msra.mxu0 0.0
    %155 = vmatpush.msra.mxu0 0.0
    %156 = vmatpush.msra.mxu0 0.0
    %157 = vmatpush.msra.mxu0 0.0
    %158 = vmatpush.msra.mxu0 0.0
    %159 = vmatpush.msra.mxu0 0.0
    %160 = vmatpush.msra.mxu0 0.0
    %161 = vmatpush.msra.mxu0 %v29
    %162 = vmatpush.msra.mxu0 %v28
    %163 = vmatmul.f32.gmra.mxu0 %v145
    %v164 = vpop.f32.mrf.mxu0
    %v165 = vadd.f32 %v63, %v164
    %166 = vdwg.mxu0
    %168 = vrot.lane.b32.xlu0 %v125, 32
    %v169 = vpop.permute.xlu0 %168
    %vm170 = vcmask 261120
    %v171 = vsel %vm170, %v169, 0
    %173 = vmatpush.msra.mxu0 0.0
    %174 = vmatpush.msra.mxu0 0.0
    %175 = vmatpush.msra.mxu0 0.0
    %176 = vmatpush.msra.mxu0 0.0
    %177 = vmatpush.msra.mxu0 0.0
    %178 = vmatpush.msra.mxu0 0.0
    %179 = vmatpush.msra.mxu0 0.0
    %180 = vmatpush.msra.mxu0 0.0
    %181 = vmatpush.msra.mxu0 0.0
    %182 = vmatpush.msra.mxu0 0.0
    %183 = vmatpush.msra.mxu0 0.0
    %184 = vmatpush.msra.mxu0 0.0
    %185 = vmatpush.msra.mxu0 %v34
    %186 = vmatpush.msra.mxu0 %v33
    %187 = vmatpush.msra.mxu0 %v32
    %188 = vmatpush.msra.mxu0 %v31
    %189 = vmatmul.f32.gmra.mxu0 %v171
    %v190 = vpop.f32.mrf.mxu0
    %v191 = vadd.f32 0.0, %v190
    %192 = vdwg.mxu0
    %v193 = vadd.f32 %v165, %v191
    %v194 = vxor.u32 %v193, 2147483648
    %v195 = vmul.f32 %v194, 1.442695
    %v196 = vpow.pop %v195
    %v197 = vadd.f32 %v196, 1.0
    %v198 = vrcp.pop %v197
    %v199 = vmul.f32 %v197, %v198
    %v200 = vsub.f32 1.0, %v199
    %v201 = vmul.f32 %v198, %v200
    %v202 = vadd.f32 %v198, %v201
    %vm203 = vweird.f32 %v197
    %vm204 = vweird.f32 %v198
    %vm205 = vmor %vm203, %vm204
    %v206 = vsel %vm205, %v198, %v202
    %v207 = vand.u32 2147483647, %v197
    %vm208 = vcmp.eq.f32.partialorder %v207, 8.507059e+37
    %v209 = vand.u32 %v197, 2147483648
    %v210 = vor.u32 1.1754944e-38, %v209
    %v211 = vsel %vm208, %v210, %v206
    %v212 = vmul.f32 1.0, %v211
    %v213 = vmul.f32 %v212, 2.0
    %v214 = vsub.f32 %v213, 1.0
    %v215 = vmul.f32 %v212, %v119
    %217 = vrot.lane.b32.xlu0 %v214, 64
    %v218 = vpop.permute.xlu0 %217
    %v220 = vmul.f32 %v212, %v218
    %222 = vrot.lane.b32.xlu0 %v220, 32
    %v223 = vpop.permute.xlu0 %222
    %v225 = vadd.f32 %v215, %v223
    %v226 = vtanh.pop %v225
    %228 = vrot.lane.b32.xlu0 %v226, 64
    %v229 = vpop.permute.xlu0 %228
    %v231 = vmul.f32 %v212, %v229
    %233 = vrot.lane.b32.xlu0 %v225, 96
    %v234 = vpop.permute.xlu0 %233
    %v235 = vsel %vm170, %v234, 0
    %237 = vmatpush.msra.mxu0 0.0
    %238 = vmatpush.msra.mxu0 0.0
    %239 = vmatpush.msra.mxu0 0.0
    %240 = vmatpush.msra.mxu0 0.0
    %241 = vmatpush.msra.mxu0 0.0
    %242 = vmatpush.msra.mxu0 0.0
    %243 = vmatpush.msra.mxu0 0.0
    %244 = vmatpush.msra.mxu0 0.0
    %245 = vmatpush.msra.mxu0 0.0
    %246 = vmatpush.msra.mxu0 0.0
    %247 = vmatpush.msra.mxu0 0.0
    %248 = vmatpush.msra.mxu0 0.0
    %249 = vmatpush.msra.mxu0 %v42
    %250 = vmatpush.msra.mxu0 %v41
    %251 = vmatpush.msra.mxu0 %v40
    %252 = vmatpush.msra.mxu0 %v39
    %253 = vmatmul.f32.gmra.mxu0 %v235
    %v254 = vpop.f32.mrf.mxu0
    %v255 = vadd.f32 0.0, %v254
    %256 = vdwg.mxu0
    %258 = vrot.lane.b32.xlu0 %v231, 32
    %v259 = vpop.permute.xlu0 %258
    %v260 = vsel %vm170, %v259, 0
    %262 = vmatpush.msra.mxu0 0.0
    %263 = vmatpush.msra.mxu0 0.0
    %264 = vmatpush.msra.mxu0 0.0
    %265 = vmatpush.msra.mxu0 0.0
    %266 = vmatpush.msra.mxu0 0.0
    %267 = vmatpush.msra.mxu0 0.0
    %268 = vmatpush.msra.mxu0 0.0
    %269 = vmatpush.msra.mxu0 0.0
    %270 = vmatpush.msra.mxu0 0.0
    %271 = vmatpush.msra.mxu0 0.0
    %272 = vmatpush.msra.mxu0 0.0
    %273 = vmatpush.msra.mxu0 0.0
    %274 = vmatpush.msra.mxu0 %v38
    %275 = vmatpush.msra.mxu0 %v37
    %276 = vmatpush.msra.mxu0 %v36
    %277 = vmatpush.msra.mxu0 %v35
    %278 = vmatmul.f32.gmra.mxu0 %v260
    %v279 = vpop.f32.mrf.mxu0
    %v280 = vadd.f32 %v255, %v279
    %281 = vdwg.mxu0
    %v282 = vperm.slane %v43, 0
    %v283 = vadd.f32 %v280, %v282
    %vm284 = vcmp.lt.s32.totalorder %v45, 16
    %v285 = vsel %vm284, %v283, -3.4028235e+38
    %286 = vmax.xlane.f32.xlu0 %v285
    %v287 = vpop.xlane.xlu0 %286
    %v288 = vsub.f32 %v285, %v287
    %v289 = vmul.f32 %v288, 1.442695
    %v290 = vpow.pop %v289
    %v291 = vsel %vm284, %v290, 0.0
    %292 = vadd.xlane.f32.xlu0 %v291
    %v293 = vpop.xlane.xlu0 %292
    %v294 = vlog2.pop %v293
    %v295 = vmul.f32 %v294, 0.6931472
    %v296 = vsub.f32 %v288, %v295
    %v297 = vsel %vm284, %v296, %v283
    %298 = vst [vmem:[#allocation5] sm:$0xff] %v297
    // Predicated region
    $region14: #{tpu_custom_call.1} parent=1 // pred_check
      _
    $region15: #{tpu_custom_call.1} parent=1 // pred_check_branch
      %300 = sbr.rel (0) target = $region17
    $region16: #{tpu_custom_call.1} parent=1 // pred_region
      %302 = vsyncadd [#allocation4], 0
      %s304 = sshll.u32 [#allocation5], 4
      %s305 = int_to_ptr.vmem [resolvable:$true] %s304
      %s306 = sshll.u32 %s2, 4
      %s307 = int_to_ptr.hbm [resolvable:$true] %s306
      %309 = dma.vmem_to_hbm [thread:$0]  %s305, 128, %s307, [#allocation4]
    $region17: #{tpu_custom_call.1} parent=1 // pred_fallthru
      _
    // Predicated region
    $region18: #{tpu_custom_call.1} parent=1 // pred_check
      _
    $region19: #{tpu_custom_call.1} parent=1 // pred_check_branch
      %311 = sbr.rel (0) target = $region21
    $region20: #{tpu_custom_call.1} parent=1 // pred_region
      %313 = dma.done [#allocation4], 128
    $region21: #{tpu_custom_call.1} parent=1 // pred_fallthru
      _
    %314 = vsyncpa [#allocation3], 1
    %315 = vsyncpa [#allocation4], 1

</llo_original>
